<compile_context>
chip_gen: v7x
topology: tpu7x:2x2x1
jax: 0.10.0
libtpu: 0.0.40
codegen_flags: <defaults>
</compile_context>

<pallas_src>
import jax
import jax.numpy as jnp
from jax import lax
from jax.experimental import pallas as pl
from jax.experimental.pallas import tpu as pltpu

_MIB = 1024 * 1024


def _round_up(x, m):
    return -(-x // m) * m


def _sublane_pack(itemsize):
    # Sub-32-bit dtypes pack along sublanes: f32 tiles (8,128), bf16 (16,128),
    # int8/fp8 (32,128).
    return max(8, 32 // itemsize)


def _step_bytes(tb, G, tn, in_isz, out_isz):
    """Double-buffered VMEM bytes for one grid step, incl. sublane/lane padding."""
    g_pad = _round_up(G, _sublane_pack(in_isz))
    tn_pad = _round_up(tn, 128)
    tb_pad = _round_up(tb, 8)
    in_tile = tb * g_pad * tn_pad * in_isz
    out_tile = tb_pad * tn_pad * out_isz
    return 2 * in_tile + 2 * out_tile


def _tile_candidates(dim, quantum, min_tile=None):
    """Legal block sizes: the full extent, or multiples of `quantum` that divide
    `dim` exactly (every grid step is a full block), optionally >= min_tile."""
    cands = {dim}
    t = quantum
    while t < dim:
        if dim % t == 0 and (min_tile is None or t >= min_tile):
            cands.add(t)
        t += quantum
    return sorted(cands, reverse=True)


def _choose_tiles(B, G, N, in_isz, out_isz, budget_bytes):
    """Largest (tb, tn) whose padding-aware double-buffered tiles fit the VMEM
    budget.  Prefer wide lane-dense N slabs (contiguous DMA, unmasked stores)
    and tile the batch axis; keep contiguous HBM runs >= ~2 KiB."""
    min_tn = max(128, _round_up(2048 // in_isz, 128))
    tb_cands = _tile_candidates(B, 8)
    for tn_cands in (_tile_candidates(N, 128, min_tile=min_tn),
                     _tile_candidates(N, 128)):        # relax run floor only as last resort
        for tn in tn_cands:                            # widest lane slab first
            for tb in tb_cands:                        # then biggest batch tile
                if _step_bytes(tb, G, tn, in_isz, out_isz) <= budget_bytes:
                    return tb, tn
    return tb_cands[-1], _tile_candidates(N, 128)[-1]  # smallest legal (validated later)


def _vmem_defaults():
    """Generation-aware VMEM budget/limit: ~32/48 MiB on 128 MiB parts (v5e/v6e),
    ~24/40 MiB on 64 MiB/TC parts (v7x)."""
    cap = 128 * _MIB
    try:
        cap_attr = getattr(pltpu.get_tpu_info(), "vmem_capacity_bytes", None)
        if cap_attr:
            cap = int(cap_attr)
    except Exception:
        pass
    return min(32 * _MIB, (3 * cap) // 8), min(48 * _MIB, (5 * cap) // 8)


def _make_kernel(G, tb, tn, in_dtype):
    in_isz = jnp.dtype(in_dtype).itemsize
    convert_slab = in_isz < 4   # bf16/int8/fp8: convert a whole sub-slab once per chunk

    # Row chunk: dim 0 of the (tb, G, tn) block is the untiled outer axis, so any
    # chunk size is legal; 8 rows -> one f32 sublane group of the output.
    row_chunk = 8 if tb % 8 == 0 else tb
    n_rc = tb // row_chunk

    # Lane chunk: keep the per-chunk working set (acc + in-flight loads, or the
    # converted f32 sub-slab) at a small fraction of the 64-entry vreg file.
    work_factor = (G + 1) if convert_slab else 3
    lane_chunk = tn
    for c in (1024, 512, 256, 128):
        if c <= tn and tn % c == 0 and work_factor * row_chunk * c * 4 <= 160 * 1024:
            lane_chunk = c
            break
    n_lc = tn // lane_chunk

    def kernel(coef_ref, x_ref, o_ref):
        # coef_ref: (G,) f32 in SMEM (scalar prefetch)
        # x_ref:    (tb, G, tn) input dtype in VMEM
        # o_ref:    (tb, tn) f32 in VMEM
        coefs = [coef_ref[g] for g in range(G)]   # hoist SMEM scalar reads out of loops

        def emit_chunk(r, l):
            rows, lanes = pl.ds(r, row_chunk), pl.ds(l, lane_chunk)
            if convert_slab:
                # One conversion per chunk; per-g slices then come from the f32
                # slab (no per-g extraction from the packed sub-32-bit layout).
                slab = x_ref[rows, :, lanes].astype(jnp.float32)
                acc = coefs[0] * slab[:, 0, :]
                for g in range(1, G):
                    acc = acc + coefs[g] * slab[:, g, :]
            else:
                acc = coefs[0] * x_ref[rows, 0, lanes].astype(jnp.float32)
                for g in range(1, G):
                    acc = acc + coefs[g] * x_ref[rows, g, lanes].astype(jnp.float32)
            o_ref[rows, lanes] = acc

        if n_rc == 1 and n_lc == 1:
            emit_chunk(0, 0)
        else:
            def row_body(rc_i, carry):
                r = pl.multiple_of(rc_i * row_chunk, row_chunk)

                def lane_body(lc_i, c):
                    l = pl.multiple_of(lc_i * lane_chunk, lane_chunk)
                    emit_chunk(r, l)
                    return c

                lax.fori_loop(0, n_lc, lane_body, 0)
                return carry

            lax.fori_loop(0, n_rc, row_body, 0)

    return kernel


def gaussian_basis_forward(coefficients, exp_values, *, tb=None, tn=None,
                           vmem_budget_bytes=None, vmem_limit_bytes=None):
    """coefficients: (G,); exp_values: (B, G, N) f32/bf16 -> (B, N) f32."""
    B, G, N = exp_values.shape
    assert coefficients.shape == (G,)
    coef_f32 = coefficients.astype(jnp.float32)   # f32 coefficients + f32 accumulation

    in_isz = jnp.dtype(exp_values.dtype).itemsize
    out_isz = 4

    auto_budget, auto_limit = _vmem_defaults()
    if vmem_budget_bytes is None:
        vmem_budget_bytes = auto_budget
    if vmem_limit_bytes is None:
        vmem_limit_bytes = auto_limit

    auto = tb is None and tn is None
    a_tb, a_tn = _choose_tiles(B, G, N, in_isz, out_isz, vmem_budget_bytes)
    tb = a_tb if tb is None else tb
    tn = a_tn if tn is None else tn

    if B % tb != 0 or N % tn != 0:
        raise ValueError(
            f"tile sizes must divide the array: tb={tb} vs B={B}, tn={tn} vs N={N} "
            "(partial blocks would leave output elements unwritten).")

    if auto:
        # >=4 grid steps when possible (v7x has 2 TensorCores; multiple steps also
        # let output writeback hide under the next input DMA).  Halve tb first:
        # the (tb, G, tn) block keeps one contiguous HBM run per batch row.
        while (B // tb) * (N // tn) < 4 and tb % 16 == 0:
            tb //= 2
        # Last resort: split N, but keep contiguous runs >= 2 KiB and lane-aligned.
        while ((B // tb) * (N // tn) < 2 and tn % 256 == 0
               and (tn // 2) * in_isz >= 2048):
            tn //= 2

    step = _step_bytes(tb, G, tn, in_isz, out_isz)
    if step > vmem_limit_bytes:
        raise ValueError(
            f"chosen tiles (tb={tb}, tn={tn}) need ~{step} bytes of double-buffered "
            f"VMEM, exceeding vmem_limit_bytes={vmem_limit_bytes}; pass smaller "
            "tb/tn or a larger limit.")

    grid = (B // tb, N // tn)
    kernel = _make_kernel(G, tb, tn, exp_values.dtype)

    return pl.pallas_call(
        kernel,
        out_shape=jax.ShapeDtypeStruct((B, N), jnp.float32),
        grid_spec=pltpu.PrefetchScalarGridSpec(
            num_scalar_prefetch=1,     # coefficients -> SMEM once, not per grid step
            grid=grid,
            in_specs=[pl.BlockSpec((tb, G, tn), lambda i, j, coef: (i, 0, j))],
            out_specs=pl.BlockSpec((tb, tn), lambda i, j, coef: (i, j)),
        ),
        compiler_params=pltpu.CompilerParams(
            dimension_semantics=("parallel", "parallel"),
            vmem_limit_bytes=vmem_limit_bytes,
        ),
        cost_estimate=pl.CostEstimate(
            flops=2 * B * G * N,
            transcendentals=0,
            bytes_accessed=B * G * N * in_isz + B * N * out_isz + G * 4,
        ),
    )(coef_f32, exp_values)


if __name__ == "__main__":
    key = jax.random.PRNGKey(0)
    k_coef, k_x1, k_x2 = jax.random.split(key, 3)

    G = 8  # grid_count
    # Mirrors torch.randn(grid_count) * 0.1 parameter init.
    coefficients = jax.random.normal(k_coef, (G,), dtype=jnp.float32) * 0.1

    # --- Small demo shape: (batch, grid_count, features) = (2, 8, 512) ---------
    B1, N1 = 2, 512
    x1 = jax.random.normal(k_x1, (B1, G, N1), dtype=jnp.float32)
    ref1 = (coefficients[None, :, None] * x1).sum(axis=1)

    out1 = jax.block_until_ready(gaussian_basis_forward(coefficients, x1))
    assert out1.shape == (B1, N1)
    assert jnp.allclose(out1, ref1, atol=1e-5, rtol=1e-5)

    # Manual narrow-tile path (multi grid step along N).
    out1t = jax.block_until_ready(gaussian_basis_forward(coefficients, x1, tn=128))
    assert jnp.allclose(out1t, ref1, atol=1e-5, rtol=1e-5)

    # --- Slightly larger (still small) case: multi grid step + in-kernel chunks -
    B2, N2 = 16, 2048
    x2 = jax.random.normal(k_x2, (B2, G, N2), dtype=jnp.float32)
    ref2 = (coefficients[None, :, None] * x2).sum(axis=1)

    out2 = jax.block_until_ready(gaussian_basis_forward(coefficients, x2))
    assert jnp.allclose(out2, ref2, atol=1e-5, rtol=1e-5)

    # Manual big-tile path: exercises nested row/lane chunk loops in-kernel.
    out2m = jax.block_until_ready(
        gaussian_basis_forward(coefficients, x2, tb=16, tn=2048))
    assert jnp.allclose(out2m, ref2, atol=1e-5, rtol=1e-5)

    # --- bf16 storage / f32 accumulation path (slab-convert kernel variant) ----
    x2_bf16 = x2.astype(jnp.bfloat16)
    ref2b = (coefficients[None, :, None] * x2_bf16.astype(jnp.float32)).sum(axis=1)
    out2b = jax.block_until_ready(gaussian_basis_forward(coefficients, x2_bf16))
    assert jnp.allclose(out2b, ref2b, atol=1e-4, rtol=1e-4)

    print("KERNEL_OK")
</pallas_src>

<mosaic_0001>
module attributes {stable_mosaic.version = 11 : i64} {
  func.func @kernel(%arg0: i32, %arg1: i32, %arg2: memref<8xf32, #tpu.memory_space<smem>>, %arg3: memref<2x8x512xf32, #tpu.memory_space<vmem>>, %arg4: memref<2x512xf32, #tpu.memory_space<vmem>>) attributes {dimension_semantics = [#tpu.dimension_semantics<parallel>, #tpu.dimension_semantics<parallel>], iteration_bounds = array<i64: 1, 1>, scalar_prefetch = 1 : i64, scratch_operands = 0 : i64, tpu.core_type = #tpu.core_type<tc>, window_params = [{transform_indices = @transform_0, window_bounds = array<i64: 2, 8, 512>}, {transform_indices = @transform_1, window_bounds = array<i64: 2, 512>}]} {
    %c0 = arith.constant 0 : index
    %0 = memref.load %arg2[%c0] : memref<8xf32, #tpu.memory_space<smem>>
    %c1 = arith.constant 1 : index
    %1 = memref.load %arg2[%c1] : memref<8xf32, #tpu.memory_space<smem>>
    %c2 = arith.constant 2 : index
    %2 = memref.load %arg2[%c2] : memref<8xf32, #tpu.memory_space<smem>>
    %c3 = arith.constant 3 : index
    %3 = memref.load %arg2[%c3] : memref<8xf32, #tpu.memory_space<smem>>
    %c4 = arith.constant 4 : index
    %4 = memref.load %arg2[%c4] : memref<8xf32, #tpu.memory_space<smem>>
    %c5 = arith.constant 5 : index
    %5 = memref.load %arg2[%c5] : memref<8xf32, #tpu.memory_space<smem>>
    %c6 = arith.constant 6 : index
    %6 = memref.load %arg2[%c6] : memref<8xf32, #tpu.memory_space<smem>>
    %c7 = arith.constant 7 : index
    %7 = memref.load %arg2[%c7] : memref<8xf32, #tpu.memory_space<smem>>
    %c0_0 = arith.constant 0 : index
    %c0_1 = arith.constant 0 : index
    %c0_2 = arith.constant 0 : index
    %8 = vector.load %arg3[%c0_0, %c0_1, %c0_2] : memref<2x8x512xf32, #tpu.memory_space<vmem>>, vector<2x1x512xf32>
    %9 = vector.shape_cast %8 : vector<2x1x512xf32> to vector<2x512xf32>
    %10 = vector.broadcast %0 : f32 to vector<2x512xf32>
    %11 = arith.mulf %10, %9 : vector<2x512xf32>
    %c0_3 = arith.constant 0 : index
    %c1_4 = arith.constant 1 : index
    %c0_5 = arith.constant 0 : index
    %12 = vector.load %arg3[%c0_3, %c1_4, %c0_5] : memref<2x8x512xf32, #tpu.memory_space<vmem>>, vector<2x1x512xf32>
    %13 = vector.shape_cast %12 : vector<2x1x512xf32> to vector<2x512xf32>
    %14 = vector.broadcast %1 : f32 to vector<2x512xf32>
    %15 = arith.mulf %14, %13 : vector<2x512xf32>
    %16 = arith.addf %11, %15 : vector<2x512xf32>
    %c0_6 = arith.constant 0 : index
    %c2_7 = arith.constant 2 : index
    %c0_8 = arith.constant 0 : index
    %17 = vector.load %arg3[%c0_6, %c2_7, %c0_8] : memref<2x8x512xf32, #tpu.memory_space<vmem>>, vector<2x1x512xf32>
    %18 = vector.shape_cast %17 : vector<2x1x512xf32> to vector<2x512xf32>
    %19 = vector.broadcast %2 : f32 to vector<2x512xf32>
    %20 = arith.mulf %19, %18 : vector<2x512xf32>
    %21 = arith.addf %16, %20 : vector<2x512xf32>
    %c0_9 = arith.constant 0 : index
    %c3_10 = arith.constant 3 : index
    %c0_11 = arith.constant 0 : index
    %22 = vector.load %arg3[%c0_9, %c3_10, %c0_11] : memref<2x8x512xf32, #tpu.memory_space<vmem>>, vector<2x1x512xf32>
    %23 = vector.shape_cast %22 : vector<2x1x512xf32> to vector<2x512xf32>
    %24 = vector.broadcast %3 : f32 to vector<2x512xf32>
    %25 = arith.mulf %24, %23 : vector<2x512xf32>
    %26 = arith.addf %21, %25 : vector<2x512xf32>
    %c0_12 = arith.constant 0 : index
    %c4_13 = arith.constant 4 : index
    %c0_14 = arith.constant 0 : index
    %27 = vector.load %arg3[%c0_12, %c4_13, %c0_14] : memref<2x8x512xf32, #tpu.memory_space<vmem>>, vector<2x1x512xf32>
    %28 = vector.shape_cast %27 : vector<2x1x512xf32> to vector<2x512xf32>
    %29 = vector.broadcast %4 : f32 to vector<2x512xf32>
    %30 = arith.mulf %29, %28 : vector<2x512xf32>
    %31 = arith.addf %26, %30 : vector<2x512xf32>
    %c0_15 = arith.constant 0 : index
    %c5_16 = arith.constant 5 : index
    %c0_17 = arith.constant 0 : index
    %32 = vector.load %arg3[%c0_15, %c5_16, %c0_17] : memref<2x8x512xf32, #tpu.memory_space<vmem>>, vector<2x1x512xf32>
    %33 = vector.shape_cast %32 : vector<2x1x512xf32> to vector<2x512xf32>
    %34 = vector.broadcast %5 : f32 to vector<2x512xf32>
    %35 = arith.mulf %34, %33 : vector<2x512xf32>
    %36 = arith.addf %31, %35 : vector<2x512xf32>
    %c0_18 = arith.constant 0 : index
    %c6_19 = arith.constant 6 : index
    %c0_20 = arith.constant 0 : index
    %37 = vector.load %arg3[%c0_18, %c6_19, %c0_20] : memref<2x8x512xf32, #tpu.memory_space<vmem>>, vector<2x1x512xf32>
    %38 = vector.shape_cast %37 : vector<2x1x512xf32> to vector<2x512xf32>
    %39 = vector.broadcast %6 : f32 to vector<2x512xf32>
    %40 = arith.mulf %39, %38 : vector<2x512xf32>
    %41 = arith.addf %36, %40 : vector<2x512xf32>
    %c0_21 = arith.constant 0 : index
    %c7_22 = arith.constant 7 : index
    %c0_23 = arith.constant 0 : index
    %42 = vector.load %arg3[%c0_21, %c7_22, %c0_23] : memref<2x8x512xf32, #tpu.memory_space<vmem>>, vector<2x1x512xf32>
    %43 = vector.shape_cast %42 : vector<2x1x512xf32> to vector<2x512xf32>
    %44 = vector.broadcast %7 : f32 to vector<2x512xf32>
    %45 = arith.mulf %44, %43 : vector<2x512xf32>
    %46 = arith.addf %41, %45 : vector<2x512xf32>
    %c0_24 = arith.constant 0 : index
    %c0_25 = arith.constant 0 : index
    %47 = vector.load %arg4[%c0_24, %c0_25] : memref<2x512xf32, #tpu.memory_space<vmem>>, vector<2x512xf32>
    tpu.vector_store %arg4[%c0_24, %c0_25], %46 {strides = array<i32>} : memref<2x512xf32, #tpu.memory_space<vmem>>, vector<2x512xf32>,
    return
  }
  func.func @transform_0(%arg0: i32, %arg1: i32, %arg2: memref<8xf32, #tpu.memory_space<smem>>) -> (i32, i32, i32) {
    %c0_i32 = arith.constant 0 : i32
    %c0_i32_0 = arith.constant 0 : i32
    return %arg0, %c0_i32, %arg1 : i32, i32, i32
  }
  func.func @transform_1(%arg0: i32, %arg1: i32, %arg2: memref<8xf32, #tpu.memory_space<smem>>) -> (i32, i32) {
    %c0_i32 = arith.constant 0 : i32
    return %arg0, %arg1 : i32, i32
  }
}

</mosaic_0001>

<llo_original>
// kernel: tpu_custom_call.1
$region0: #{tpu_custom_call.1}
  #allocation0 [shape = 'u32[]', space=smem, size = 0x4, offset = 0x4, fixed_abs, tag = 'smem constant byte address 0x4 - core index']
  #allocation1 [shape = 'u32[144,128]{1,0:T(1,128)}', space=vmem, size = 0x12000, scoped, tag = 'internal scratch']
  #allocation2 [shape = 's32[1]{0}', space=sflag, size = 0x4, scoped, tag = 'scoped memory for tpu_custom_call.1']
  #allocation3 [shape = 'u8[512]{0}', space=smem, size = 0x200, scoped, tag = 'prefetched SMEM operand 0']
  %s0 = inlined_call_operand.hbm [shape: f32[8], index: 0, kind: input, shape index: {}]
  %s1 = inlined_call_operand.hbm [shape: f32[2,8,512], index: 1, kind: input, shape index: {}]
  %s2 = inlined_call_operand.hbm [shape: f32[2,512], index: 2, kind: output, shape index: {}]
  %s3 = sld [smem:[#allocation0]]
  $region18: #{tpu_custom_call.1} parent=0
    _
  %s5 = ssub.s32 1, %s3
  %s6 = scalar_select 0, %s5, %s3
  %8 = dma.hbm_to_smem %s0, 16, [#allocation3], [#allocation2]
  %9 = dma.done [#allocation2], 16
  %10 = sfence
  $region1: #{tpu_custom_call.1} parent=0
    #allocation4 [shape = 'u8[32768]{0}', space=vmem, size = 0x8000, scoped, tag = 'input window, operand 1, single buffered']
    #allocation5 [shape = 's32[1]{0}', space=sflag, size = 0x4, scoped, tag = 'scoped memory for tpu_custom_call.1']
    #allocation6 [shape = 's32[1]{0}', space=sflag, size = 0x4, scoped, tag = 'scoped memory for tpu_custom_call.1']
    #allocation7 [shape = 'u8[4096]{0}', space=vmem, size = 0x1000, scoped, tag = 'output window, operand 0, single buffered']
    %11 = vsyncpa [#allocation5], 0
    %12 = vsyncpa [#allocation6], 0
    // Predicated region
    $region2: #{tpu_custom_call.1} parent=1 // pred_check
      _
    $region3: #{tpu_custom_call.1} parent=1 // pred_check_branch
      %14 = sbr.rel (0) target = $region5
    $region4: #{tpu_custom_call.1} parent=1 // pred_region
      %s16 = ssub.s32 1024, 1024
      %17 = vsyncadd [#allocation5], %s16
      %s18 = sshll.u32 [#allocation4], 4
      %s19 = int_to_ptr.vmem [resolvable:$true] %s18
      %24 = dma.hbm_to_vmem [thread:$0]  %s1, 1024, %s19, [#allocation5], 512, 512, 32
    $region5: #{tpu_custom_call.1} parent=1 // pred_fallthru
      _
    // Predicated region
    $region6: #{tpu_custom_call.1} parent=1 // pred_check
      _
    $region7: #{tpu_custom_call.1} parent=1 // pred_check_branch
      %26 = sbr.rel (0) target = $region9
    $region8: #{tpu_custom_call.1} parent=1 // pred_region
      %27 = dma.done [#allocation5], 1024
    $region9: #{tpu_custom_call.1} parent=1 // pred_fallthru
      _
    %s28 = sld [smem:[#allocation3]]
    %s29 = sld [smem:[#allocation3 + $0x1]]
    %s30 = sld [smem:[#allocation3 + $0x2]]
    %s31 = sld [smem:[#allocation3 + $0x3]]
    %s32 = sld [smem:[#allocation3 + $0x4]]
    %s33 = sld [smem:[#allocation3 + $0x5]]
    %s34 = sld [smem:[#allocation3 + $0x6]]
    %s35 = sld [smem:[#allocation3 + $0x7]]
    %v36 = vld [vmem:[#allocation4] ss:$8 sm:$0xf]
    %s37 = scalar_lea.vmem [#allocation4], 32
    %v38 = vld [vmem:[%s37] ss:$8 sm:$0xf]
    %v39 = vstv %s28
    %v40 = vmul.f32 %v39, %v36
    %v41 = vmul.f32 %v39, %v38
    %s42 = scalar_lea.vmem [#allocation4], 1
    %v43 = vld [vmem:[%s42] ss:$8 sm:$0xf]
    %s44 = scalar_lea.vmem [#allocation4], 33
    %v45 = vld [vmem:[%s44] ss:$8 sm:$0xf]
    %v46 = vstv %s29
    %v47 = vmul.f32 %v46, %v43
    %v48 = vmul.f32 %v46, %v45
    %v49 = vadd.f32 %v40, %v47
    %v50 = vadd.f32 %v41, %v48
    %s51 = scalar_lea.vmem [#allocation4], 2
    %v52 = vld [vmem:[%s51] ss:$8 sm:$0xf]
    %s53 = scalar_lea.vmem [#allocation4], 34
    %v54 = vld [vmem:[%s53] ss:$8 sm:$0xf]
    %v55 = vstv %s30
    %v56 = vmul.f32 %v55, %v52
    %v57 = vmul.f32 %v55, %v54
    %v58 = vadd.f32 %v49, %v56
    %v59 = vadd.f32 %v50, %v57
    %s60 = scalar_lea.vmem [#allocation4], 3
    %v61 = vld [vmem:[%s60] ss:$8 sm:$0xf]
    %s62 = scalar_lea.vmem [#allocation4], 35
    %v63 = vld [vmem:[%s62] ss:$8 sm:$0xf]
    %v64 = vstv %s31
    %v65 = vmul.f32 %v64, %v61
    %v66 = vmul.f32 %v64, %v63
    %v67 = vadd.f32 %v58, %v65
    %v68 = vadd.f32 %v59, %v66
    %s69 = scalar_lea.vmem [#allocation4], 4
    %v70 = vld [vmem:[%s69] ss:$8 sm:$0xf]
    %s71 = scalar_lea.vmem [#allocation4], 36
    %v72 = vld [vmem:[%s71] ss:$8 sm:$0xf]
    %v73 = vstv %s32
    %v74 = vmul.f32 %v73, %v70
    %v75 = vmul.f32 %v73, %v72
    %v76 = vadd.f32 %v67, %v74
    %v77 = vadd.f32 %v68, %v75
    %s78 = scalar_lea.vmem [#allocation4], 5
    %v79 = vld [vmem:[%s78] ss:$8 sm:$0xf]
    %s80 = scalar_lea.vmem [#allocation4], 37
    %v81 = vld [vmem:[%s80] ss:$8 sm:$0xf]
    %v82 = vstv %s33
    %v83 = vmul.f32 %v82, %v79
    %v84 = vmul.f32 %v82, %v81
    %v85 = vadd.f32 %v76, %v83
    %v86 = vadd.f32 %v77, %v84
    %s87 = scalar_lea.vmem [#allocation4], 6
    %v88 = vld [vmem:[%s87] ss:$8 sm:$0xf]
    %s89 = scalar_lea.vmem [#allocation4], 38
    %v90 = vld [vmem:[%s89] ss:$8 sm:$0xf]
    %v91 = vstv %s34
    %v92 = vmul.f32 %v91, %v88
    %v93 = vmul.f32 %v91, %v90
    %v94 = vadd.f32 %v85, %v92
    %v95 = vadd.f32 %v86, %v93
    %s96 = scalar_lea.vmem [#allocation4], 7
    %v97 = vld [vmem:[%s96] ss:$8 sm:$0xf]
    %s98 = scalar_lea.vmem [#allocation4], 39
    %v99 = vld [vmem:[%s98] ss:$8 sm:$0xf]
    %v100 = vstv %s35
    %v101 = vmul.f32 %v100, %v97
    %v102 = vmul.f32 %v100, %v99
    %v103 = vadd.f32 %v94, %v101
    %v104 = vadd.f32 %v95, %v102
    %v107 = vcombine.low %v103, %v104
    %v109 = vunpack.c.l.s4 1935823168
    %v110 = vunpack.c.0.s8 %v109
    %v111 = vlaneseq
    %v112 = vshrl.u32 %v111, 7
    %v113 = vsub.s32 %v110, %v112
    %v114 = vrot.slane %v107, %v113
    %116 = vst [vmem:[#allocation7] sm:$0xff] %v114
    // Predicated region
    $region10: #{tpu_custom_call.1} parent=1 // pred_check
      _
    $region11: #{tpu_custom_call.1} parent=1 // pred_check_branch
      %118 = sbr.rel (0) target = $region13
    $region12: #{tpu_custom_call.1} parent=1 // pred_region
      %s120 = ssub.s32 128, 128
      %121 = vsyncadd [#allocation6], %s120
      %s123 = sshll.u32 [#allocation7], 4
      %s124 = int_to_ptr.vmem [resolvable:$true] %s123
      %126 = dma.vmem_to_hbm [thread:$0]  %s124, 128, %s2, [#allocation6]
    $region13: #{tpu_custom_call.1} parent=1 // pred_fallthru
      _
    // Predicated region
    $region14: #{tpu_custom_call.1} parent=1 // pred_check
      _
    $region15: #{tpu_custom_call.1} parent=1 // pred_check_branch
      %128 = sbr.rel (0) target = $region17
    $region16: #{tpu_custom_call.1} parent=1 // pred_region
      %129 = dma.done [#allocation6], 128
    $region17: #{tpu_custom_call.1} parent=1 // pred_fallthru
      _
    %130 = vsyncpa [#allocation5], 1
    %131 = vsyncpa [#allocation6], 1

</llo_original>
